<compile_context>
chip_gen: v5e
topology: v5e:2x2
jax: 0.10.0
libtpu: 0.0.40
codegen_flags: <defaults>
</compile_context>

<pallas_src>
import functools
import math

import jax
import jax.numpy as jnp
from jax.experimental import pallas as pl
from jax.experimental.pallas import tpu as pltpu

LANES = 128                       # vreg lane width
SUBLANE = 8                       # vreg sublane count (f32)
SMALL_N = SUBLANE * LANES         # below one vreg tile, plain XLA is cheaper
VMEM_LIMIT_BYTES = 32 * 1024 * 1024   # explicit scoped-VMEM limit (>= default everywhere)


def _round_up(x, m):
    return ((x + m - 1) // m) * m


@functools.lru_cache(maxsize=None)
def _num_tensorcores():
    """TensorCores one pallas_call can shard a 'parallel' grid axis across.

    Dual-TensorCore (megacore) chips: v4, v5p, v7x.  Falls back to 1, which is
    always correct (single-TC chips, CPU interpret, unknown devices)."""
    try:
        kind = jax.local_devices()[0].device_kind.lower()
    except Exception:
        return 1
    if ("v4" in kind) or ("v5p" in kind) or ("v7" in kind):
        return 2
    return 1


def _max_block_rows(ncores_hw):
    # Big streaming blocks so per-step DMA time dominates the ~0.35us fixed
    # per-grid-step overhead.  Dual-TC chips (v7x: ~3.2 TB/s per TC) get 8192
    # rows (4 MiB f32 / input block); single-TC chips get 4096 rows (2 MiB).
    return 8192 if ncores_hw >= 2 else 4096


def _row_layout(rows, min_itemsize):
    ncores_hw = _num_tensorcores()
    # Sublane multiple for the narrowest input dtype: 8 (f32), 16 (bf16), 32 (i8).
    mult = SUBLANE * max(1, 4 // min_itemsize)
    blk_r = min(_max_block_rows(ncores_hw), _round_up(rows, mult))
    nblk = pl.cdiv(rows, blk_r)            # total streaming blocks
    ncores = max(1, min(ncores_hw, nblk))  # drop dead core axis on tiny grids / 1-TC chips
    npc = pl.cdiv(nblk, ncores)            # blocks per core
    return blk_r, nblk, npc, ncores


# ------------------------------- kernels ----------------------------------- #

def _fold(vals, blk_r):
    # VPU-only fold of a (blk_r,128) block into an (8,128) tile.  Regrouping
    # whole (8,128) tiles is a free reshape (no cross-tile data movement).
    return jnp.sum(vals.reshape(blk_r // SUBLANE, SUBLANE, LANES), axis=0)


def _grid_ids(ncores, npc):
    if ncores == 1:
        i = pl.program_id(0)
        return i, i
    c = pl.program_id(0)
    i = pl.program_id(1)
    return i, c * npc + i


def _sum_log_kernel(x_ref, o_ref, *, rows_valid, blk_r, npc, ncores, mask_needed):
    """Accumulate per-core (8,128) partial sums of log(x)."""
    i, blk = _grid_ids(ncores, npc)

    @pl.when(i == 0)
    def _():
        o_ref[...] = jnp.zeros_like(o_ref)

    def fast():
        o_ref[...] += _fold(jnp.log(x_ref[...].astype(jnp.float32)), blk_r)

    if not mask_needed:
        fast()                                   # no partial blocks possible
    else:
        row0 = blk * blk_r
        is_full = row0 + blk_r <= rows_valid
        pl.when(is_full)(fast)                   # hot path: no iota/cmp/select

        @pl.when(jnp.logical_not(is_full))
        def _():                                 # edge / clamped-duplicate blocks only
            valid = (row0 + jax.lax.broadcasted_iota(
                jnp.int32, (blk_r, LANES), 0)) < rows_valid
            x = jnp.where(valid, x_ref[...].astype(jnp.float32), 1.0)  # log(1)=0
            o_ref[...] += _fold(jnp.log(x), blk_r)


def _sum_sqdiff_kernel(a_ref, b_ref, o_ref, *, rows_valid, blk_r, npc, ncores,
                       mask_needed):
    """Accumulate per-core (8,128) partial sums of (a - b)^2."""
    i, blk = _grid_ids(ncores, npc)

    @pl.when(i == 0)
    def _():
        o_ref[...] = jnp.zeros_like(o_ref)

    def accum(d):
        o_ref[...] += _fold(d * d, blk_r)

    def fast():
        accum(a_ref[...].astype(jnp.float32) - b_ref[...].astype(jnp.float32))

    if not mask_needed:
        fast()
    else:
        row0 = blk * blk_r
        is_full = row0 + blk_r <= rows_valid
        pl.when(is_full)(fast)

        @pl.when(jnp.logical_not(is_full))
        def _():
            valid = (row0 + jax.lax.broadcasted_iota(
                jnp.int32, (blk_r, LANES), 0)) < rows_valid
            # Mask the refs *before* arithmetic so padded garbage never enters
            # the subtraction (robust against reassociation).
            a = jnp.where(valid, a_ref[...].astype(jnp.float32), 0.0)
            b = jnp.where(valid, b_ref[...].astype(jnp.float32), 0.0)
            accum(a - b)


# ------------------------------- wrappers ----------------------------------- #

def _streaming_reduce(kernel_fn, mats, *, flops_per_elem=1,
                      transcendentals_per_elem=0):
    """Streaming reduction over one or two equally-shaped (rows,128) inputs.
    Returns the scalar sum of the (ncores*8, 128) per-core partial sums."""
    rows = mats[0].shape[0]
    min_itemsize = min(jnp.dtype(m.dtype).itemsize for m in mats)
    blk_r, nblk, npc, ncores = _row_layout(rows, min_itemsize)
    # Masking is only emitted if a partial / out-of-range block can exist.
    mask_needed = (rows % blk_r != 0) or (ncores * npc != nblk)

    kernel = functools.partial(kernel_fn, rows_valid=rows, blk_r=blk_r,
                               npc=npc, ncores=ncores, mask_needed=mask_needed)

    if ncores == 1:
        grid = (npc,)
        in_map = lambda i: (i, 0)
        out_map = lambda i: (0, 0)
        semantics = ("arbitrary",)
    else:
        grid = (ncores, npc)
        # Clamp so padded grid points never issue an out-of-bounds DMA; the
        # in-kernel row mask neutralizes their contribution.
        in_map = lambda c, i: (jnp.minimum(c * npc + i, nblk - 1), 0)
        out_map = lambda c, i: (c, 0)
        # TODO(synk): on v7x verify the 2-TC split actually materializes in the
        # lowering; if not, switch this axis to pltpu.CORE_PARALLEL.
        semantics = ("parallel", "arbitrary")

    n_elems = rows * LANES
    bytes_in = sum(int(m.size) * jnp.dtype(m.dtype).itemsize for m in mats)
    cost = pl.CostEstimate(
        flops=int(flops_per_elem * n_elems),
        transcendentals=int(transcendentals_per_elem * n_elems),
        bytes_accessed=int(bytes_in + ncores * SUBLANE * LANES * 4),
    )

    partials = pl.pallas_call(
        kernel,
        out_shape=jax.ShapeDtypeStruct((ncores * SUBLANE, LANES), jnp.float32),
        grid_spec=pltpu.PrefetchScalarGridSpec(
            num_scalar_prefetch=0,
            grid=grid,
            in_specs=[pl.BlockSpec((blk_r, LANES), in_map) for _ in mats],
            out_specs=pl.BlockSpec((SUBLANE, LANES), out_map),
        ),
        compiler_params=pltpu.CompilerParams(
            dimension_semantics=semantics,
            vmem_limit_bytes=VMEM_LIMIT_BYTES),
        cost_estimate=cost,
    )(*mats)
    return jnp.sum(partials)


def _sum_log(x):
    flat = jnp.ravel(x)
    n = flat.shape[0]
    if n < SMALL_N:                       # kernel launch would dominate
        return jnp.sum(jnp.log(flat.astype(jnp.float32)))
    n_main = (n // LANES) * LANES
    main = flat[:n_main].reshape(-1, LANES)   # free reshape when n % 128 == 0
    total = _streaming_reduce(_sum_log_kernel, [main],
                              flops_per_elem=1, transcendentals_per_elem=1)
    if n_main != n:
        # <128-element ragged tail folded in with plain jnp (no padded HBM copy).
        total = total + jnp.sum(jnp.log(flat[n_main:].astype(jnp.float32)))
    return total


def _sum_sqdiff(a, b):
    fa, fb = jnp.ravel(a), jnp.ravel(b)
    n = fa.shape[0]
    if n < SMALL_N:
        d = fa.astype(jnp.float32) - fb.astype(jnp.float32)
        return jnp.sum(d * d)
    n_main = (n // LANES) * LANES
    ma = fa[:n_main].reshape(-1, LANES)
    mb = fb[:n_main].reshape(-1, LANES)
    total = _streaming_reduce(_sum_sqdiff_kernel, [ma, mb], flops_per_elem=3)
    if n_main != n:
        d = fa[n_main:].astype(jnp.float32) - fb[n_main:].astype(jnp.float32)
        total = total + jnp.sum(d * d)
    return total


def rate_distortion_loss(output, target, lmbda):
    """JAX/Pallas equivalent of RateDistortionLoss.forward.

    output: dict with 'x_hat' (N,C,H,W) and 'likelihoods' (dict of arrays)
    target: (N,C,H,W);  lmbda: scalar Lagrangian parameter.
    """
    N, _, H, W = target.shape
    num_pixels = N * H * W

    out = {}
    out['bpp_loss'] = sum(
        _sum_log(lk) / (-math.log(2) * num_pixels)
        for lk in output['likelihoods'].values())
    # nn.MSELoss default reduction='mean' over all elements.
    out['mse_loss'] = (_sum_sqdiff(output['x_hat'], target)
                       / target.size) * (255.0 ** 2)
    out['loss'] = lmbda * out['mse_loss'] + out['bpp_loss']
    return out


# ------------------------------ demo / check -------------------------------- #

if __name__ == "__main__":
    key = jax.random.PRNGKey(0)
    k1, k2, k3, k4 = jax.random.split(key, 4)

    N, C, H, W = 2, 4, 16, 16
    target = jax.random.uniform(k1, (N, C, H, W), dtype=jnp.float32)
    x_hat = target + 0.05 * jax.random.normal(k2, (N, C, H, W),
                                              dtype=jnp.float32)
    # Likelihoods in (0, 1], two entropy-model outputs of different shapes.
    lik_y = jax.random.uniform(k3, (N, 8, 8, 8), dtype=jnp.float32,
                               minval=0.01, maxval=1.0)
    lik_z = jax.random.uniform(k4, (N, 4, 4, 4), dtype=jnp.float32,
                               minval=0.01, maxval=1.0)

    output = {'x_hat': x_hat, 'likelihoods': {'y': lik_y, 'z': lik_z}}
    lmbda = 0.01

    loss_fn = jax.jit(rate_distortion_loss)
    res = loss_fn(output, target, lmbda)
    jax.block_until_ready(res['loss'])

    # Pure-JAX reference check.
    num_pixels = N * H * W
    ref_bpp = (jnp.sum(jnp.log(lik_y)) + jnp.sum(jnp.log(lik_z))) / (
        -math.log(2) * num_pixels)
    ref_mse = jnp.mean((x_hat - target) ** 2) * 255.0 ** 2
    ref_loss = lmbda * ref_mse + ref_bpp

    assert jnp.allclose(res['bpp_loss'], ref_bpp, rtol=1e-5, atol=1e-5)
    assert jnp.allclose(res['mse_loss'], ref_mse, rtol=1e-5, atol=1e-5)
    assert jnp.allclose(res['loss'], ref_loss, rtol=1e-5, atol=1e-5)

    print("KERNEL_OK")
</pallas_src>

<mosaic_0001>
module attributes {stable_mosaic.version = 11 : i64} {
  func.func @_sum_sqdiff_kernel(%arg0: i32, %arg1: memref<16x128xf32, #tpu.memory_space<vmem>>, %arg2: memref<16x128xf32, #tpu.memory_space<vmem>>, %arg3: memref<8x128xf32, #tpu.memory_space<vmem>>) attributes {dimension_semantics = [#tpu.dimension_semantics<arbitrary>], iteration_bounds = array<i64: 1>, scalar_prefetch = 0 : i64, scratch_operands = 0 : i64, tpu.core_type = #tpu.core_type<tc>, window_params = [{transform_indices = @transform_0, window_bounds = array<i64: 16, 128>}, {transform_indices = @transform_1, window_bounds = array<i64: 16, 128>}, {pipeline_mode = #tpu.pipeline_mode<synchronous>, transform_indices = @transform_2, window_bounds = array<i64: 8, 128>}]} {
    %c0_i32 = arith.constant 0 : i32
    %0 = arith.cmpi eq, %arg0, %c0_i32 : i32
    %1 = arith.extui %0 : i1 to i32
    %c0_i32_0 = arith.constant 0 : i32
    %2 = arith.cmpi ne, %1, %c0_i32_0 : i32
    scf.if %2 {
      %cst_8 = arith.constant 0.000000e+00 : f32
      %12 = vector.broadcast %cst_8 : f32 to vector<8x128xf32>
      %c0_9 = arith.constant 0 : index
      %c0_10 = arith.constant 0 : index
      %13 = vector.load %arg3[%c0_9, %c0_10] : memref<8x128xf32, #tpu.memory_space<vmem>>, vector<8x128xf32>
      tpu.vector_store %arg3[%c0_9, %c0_10], %12 {strides = array<i32>} : memref<8x128xf32, #tpu.memory_space<vmem>>, vector<8x128xf32>,
    } else {
    }
    %c0 = arith.constant 0 : index
    %c0_1 = arith.constant 0 : index
    %3 = vector.load %arg1[%c0, %c0_1] : memref<16x128xf32, #tpu.memory_space<vmem>>, vector<16x128xf32>
    %c0_2 = arith.constant 0 : index
    %c0_3 = arith.constant 0 : index
    %4 = vector.load %arg2[%c0_2, %c0_3] : memref<16x128xf32, #tpu.memory_space<vmem>>, vector<16x128xf32>
    %5 = arith.subf %3, %4 : vector<16x128xf32>
    %c0_4 = arith.constant 0 : index
    %c0_5 = arith.constant 0 : index
    %6 = vector.load %arg3[%c0_4, %c0_5] : memref<8x128xf32, #tpu.memory_space<vmem>>, vector<8x128xf32>
    %7 = arith.mulf %5, %5 : vector<16x128xf32>
    %8 = vector.shape_cast %7 : vector<16x128xf32> to vector<2x8x128xf32>
    %cst = arith.constant dense<0.000000e+00> : vector<8x128xf32>
    %9 = vector.multi_reduction <add>, %8, %cst [0] : vector<2x8x128xf32> to vector<8x128xf32>
    %10 = arith.addf %6, %9 : vector<8x128xf32>
    %c0_6 = arith.constant 0 : index
    %c0_7 = arith.constant 0 : index
    %11 = vector.load %arg3[%c0_6, %c0_7] : memref<8x128xf32, #tpu.memory_space<vmem>>, vector<8x128xf32>
    tpu.vector_store %arg3[%c0_6, %c0_7], %10 {strides = array<i32>} : memref<8x128xf32, #tpu.memory_space<vmem>>, vector<8x128xf32>,
    return
  }
  func.func @transform_0(%arg0: i32) -> (i32, i32) {
    %c0_i32 = arith.constant 0 : i32
    %c0_i32_0 = arith.constant 0 : i32
    return %arg0, %c0_i32 : i32, i32
  }
  func.func @transform_1(%arg0: i32) -> (i32, i32) {
    %c0_i32 = arith.constant 0 : i32
    %c0_i32_0 = arith.constant 0 : i32
    return %arg0, %c0_i32 : i32, i32
  }
  func.func @transform_2(%arg0: i32) -> (i32, i32) {
    %c0_i32 = arith.constant 0 : i32
    %c0_i32_0 = arith.constant 0 : i32
    %c0_i32_1 = arith.constant 0 : i32
    return %c0_i32, %c0_i32_0 : i32, i32
  }
}

module attributes {stable_mosaic.version = 11 : i64} {
  func.func @_sum_log_kernel(%arg0: i32, %arg1: memref<8x128xf32, #tpu.memory_space<vmem>>, %arg2: memref<8x128xf32, #tpu.memory_space<vmem>>) attributes {dimension_semantics = [#tpu.dimension_semantics<arbitrary>], iteration_bounds = array<i64: 1>, scalar_prefetch = 0 : i64, scratch_operands = 0 : i64, tpu.core_type = #tpu.core_type<tc>, window_params = [{transform_indices = @transform_0, window_bounds = array<i64: 8, 128>}, {pipeline_mode = #tpu.pipeline_mode<synchronous>, transform_indices = @transform_1, window_bounds = array<i64: 8, 128>}]} {
    %c0_i32 = arith.constant 0 : i32
    %0 = arith.cmpi eq, %arg0, %c0_i32 : i32
    %1 = arith.extui %0 : i1 to i32
    %c0_i32_0 = arith.constant 0 : i32
    %2 = arith.cmpi ne, %1, %c0_i32_0 : i32
    scf.if %2 {
      %cst_6 = arith.constant 0.000000e+00 : f32
      %10 = vector.broadcast %cst_6 : f32 to vector<8x128xf32>
      %c0_7 = arith.constant 0 : index
      %c0_8 = arith.constant 0 : index
      %11 = vector.load %arg2[%c0_7, %c0_8] : memref<8x128xf32, #tpu.memory_space<vmem>>, vector<8x128xf32>
      tpu.vector_store %arg2[%c0_7, %c0_8], %10 {strides = array<i32>} : memref<8x128xf32, #tpu.memory_space<vmem>>, vector<8x128xf32>,
    } else {
    }
    %c0 = arith.constant 0 : index
    %c0_1 = arith.constant 0 : index
    %3 = vector.load %arg2[%c0, %c0_1] : memref<8x128xf32, #tpu.memory_space<vmem>>, vector<8x128xf32>
    %c0_2 = arith.constant 0 : index
    %c0_3 = arith.constant 0 : index
    %4 = vector.load %arg1[%c0_2, %c0_3] : memref<8x128xf32, #tpu.memory_space<vmem>>, vector<8x128xf32>
    %5 = math.log %4 : vector<8x128xf32>
    %6 = vector.shape_cast %5 : vector<8x128xf32> to vector<1x8x128xf32>
    %cst = arith.constant dense<0.000000e+00> : vector<8x128xf32>
    %7 = vector.multi_reduction <add>, %6, %cst [0] : vector<1x8x128xf32> to vector<8x128xf32>
    %8 = arith.addf %3, %7 : vector<8x128xf32>
    %c0_4 = arith.constant 0 : index
    %c0_5 = arith.constant 0 : index
    %9 = vector.load %arg2[%c0_4, %c0_5] : memref<8x128xf32, #tpu.memory_space<vmem>>, vector<8x128xf32>
    tpu.vector_store %arg2[%c0_4, %c0_5], %8 {strides = array<i32>} : memref<8x128xf32, #tpu.memory_space<vmem>>, vector<8x128xf32>,
    return
  }
  func.func @transform_0(%arg0: i32) -> (i32, i32) {
    %c0_i32 = arith.constant 0 : i32
    %c0_i32_0 = arith.constant 0 : i32
    return %arg0, %c0_i32 : i32, i32
  }
  func.func @transform_1(%arg0: i32) -> (i32, i32) {
    %c0_i32 = arith.constant 0 : i32
    %c0_i32_0 = arith.constant 0 : i32
    %c0_i32_1 = arith.constant 0 : i32
    return %c0_i32, %c0_i32_0 : i32, i32
  }
}

</mosaic_0001>

<llo_original>
// kernel: rate_distortion_loss.2
$region0: #{rate_distortion_loss.2}
  #allocation0 [shape = 'u32[]', space=smem, size = 0x4, offset = 0x4, fixed_abs, tag = 'smem constant byte address 0x4 - core index']
  #allocation1 [shape = 'u32[72,128]{1,0:T(1,128)}', space=vmem, size = 0x9000, scoped, tag = 'internal scratch']
  %s0 = inlined_call_operand.vmem [shape: f32[8,128], index: 0, kind: input, shape index: {}]
  %s1 = inlined_call_operand.vmem [shape: f32[8,128], index: 1, kind: output, shape index: {}]
  %s2 = sld [smem:[#allocation0]]
  $region18: #{rate_distortion_loss.2} parent=0
    _
  %s4 = ssub.s32 1, %s2
  %s5 = scalar_select 0, %s4, %s2
  // Predicated region
  $region2: #{rate_distortion_loss.2} parent=0 // pred_check
    _
  $region3: #{rate_distortion_loss.2} parent=0 // pred_check_branch
    %7 = sbr.rel (0) target = $region5
  $region4: #{rate_distortion_loss.2} parent=0 // pred_region
    _
  $region5: #{rate_distortion_loss.2} parent=0 // pred_fallthru
    _
  %p8 = scmp.eq.s32.totalorder 0, 0
  // Predicated region
  $region6: #{rate_distortion_loss.2} parent=0 // pred_check
    %p9 = pneg %p8
  $region7: #{rate_distortion_loss.2} parent=0 // pred_check_branch
    %11 = sbr.rel (%p9) target = $region9
  $region8: #{rate_distortion_loss.2} parent=0 // pred_region
    %12 = vst [vmem:[%s1] sm:$0xff] 0.0
  $region9: #{rate_distortion_loss.2} parent=0 // pred_fallthru
    _
  %v13 = vld [vmem:[%s1] sm:$0xff]
  %v14 = vld [vmem:[%s0] sm:$0xff]
  %v15 = vlog2.pop %v14
  %v16 = vmul.f32 %v15, 0.6931472
  %v17 = vadd.f32 %v16, 0.0
  %v18 = vadd.f32 %v13, %v17
  %19 = vst [vmem:[%s1] sm:$0xff] %v18
  // Predicated region
  $region10: #{rate_distortion_loss.2} parent=0 // pred_check
    _
  $region11: #{rate_distortion_loss.2} parent=0 // pred_check_branch
    %21 = sbr.rel (0) target = $region13
  $region12: #{rate_distortion_loss.2} parent=0 // pred_region
    _
  $region13: #{rate_distortion_loss.2} parent=0 // pred_fallthru
    _
  // Predicated region
  $region14: #{rate_distortion_loss.2} parent=0 // pred_check
    _
  $region15: #{rate_distortion_loss.2} parent=0 // pred_check_branch
    %23 = sbr.rel (0) target = $region17
  $region16: #{rate_distortion_loss.2} parent=0 // pred_region
    _
  $region17: #{rate_distortion_loss.2} parent=0 // pred_fallthru
    _

// kernel: rate_distortion_loss.3
$region0: #{rate_distortion_loss.3}
  #allocation0 [shape = 'u32[]', space=smem, size = 0x4, offset = 0x4, fixed_abs, tag = 'smem constant byte address 0x4 - core index']
  #allocation1 [shape = 'u32[72,128]{1,0:T(1,128)}', space=vmem, size = 0x9000, scoped, tag = 'internal scratch']
  %s0 = inlined_call_operand.vmem [shape: f32[16,128], index: 0, kind: input, shape index: {}]
  %s1 = inlined_call_operand.vmem [shape: f32[16,128], index: 1, kind: input, shape index: {}]
  %s2 = inlined_call_operand.vmem [shape: f32[8,128], index: 2, kind: output, shape index: {}]
  %s3 = sld [smem:[#allocation0]]
  $region22: #{rate_distortion_loss.3} parent=0
    _
  %s5 = ssub.s32 1, %s3
  %s6 = scalar_select 0, %s5, %s3
  // Predicated region
  $region2: #{rate_distortion_loss.3} parent=0 // pred_check
    _
  $region3: #{rate_distortion_loss.3} parent=0 // pred_check_branch
    %8 = sbr.rel (0) target = $region5
  $region4: #{rate_distortion_loss.3} parent=0 // pred_region
    _
  $region5: #{rate_distortion_loss.3} parent=0 // pred_fallthru
    _
  // Predicated region
  $region6: #{rate_distortion_loss.3} parent=0 // pred_check
    _
  $region7: #{rate_distortion_loss.3} parent=0 // pred_check_branch
    %10 = sbr.rel (0) target = $region9
  $region8: #{rate_distortion_loss.3} parent=0 // pred_region
    _
  $region9: #{rate_distortion_loss.3} parent=0 // pred_fallthru
    _
  %p11 = scmp.eq.s32.totalorder 0, 0
  // Predicated region
  $region10: #{rate_distortion_loss.3} parent=0 // pred_check
    %p12 = pneg %p11
  $region11: #{rate_distortion_loss.3} parent=0 // pred_check_branch
    %14 = sbr.rel (%p12) target = $region13
  $region12: #{rate_distortion_loss.3} parent=0 // pred_region
    %15 = vst [vmem:[%s2] sm:$0xff] 0.0
  $region13: #{rate_distortion_loss.3} parent=0 // pred_fallthru
    _
  %v16 = vld [vmem:[%s0] sm:$0xff]
  %v17 = vld [vmem:[%s0 + $0x8] sm:$0xff]
  %v18 = vld [vmem:[%s1] sm:$0xff]
  %v19 = vld [vmem:[%s1 + $0x8] sm:$0xff]
  %v20 = vsub.f32 %v16, %v18
  %v21 = vsub.f32 %v17, %v19
  %v22 = vld [vmem:[%s2] sm:$0xff]
  %v23 = vmul.f32 %v20, %v20
  %v24 = vmul.f32 %v21, %v21
  %v25 = vadd.f32 %v23, %v24
  %v26 = vadd.f32 %v22, %v25
  %27 = vst [vmem:[%s2] sm:$0xff] %v26
  // Predicated region
  $region14: #{rate_distortion_loss.3} parent=0 // pred_check
    _
  $region15: #{rate_distortion_loss.3} parent=0 // pred_check_branch
    %29 = sbr.rel (0) target = $region17
  $region16: #{rate_distortion_loss.3} parent=0 // pred_region
    _
  $region17: #{rate_distortion_loss.3} parent=0 // pred_fallthru
    _
  // Predicated region
  $region18: #{rate_distortion_loss.3} parent=0 // pred_check
    _
  $region19: #{rate_distortion_loss.3} parent=0 // pred_check_branch
    %31 = sbr.rel (0) target = $region21
  $region20: #{rate_distortion_loss.3} parent=0 // pred_region
    _
  $region21: #{rate_distortion_loss.3} parent=0 // pred_fallthru
    _

</llo_original>
